<compile_context>
chip_gen: v6e
topology: v6e:2x2x1
jax: 0.10.0
libtpu: 0.0.40
codegen_flags: <defaults>
</compile_context>

<pallas_src>
import math
import functools

import jax
import jax.numpy as jnp
from jax import lax
from jax.experimental import pallas as pl
from jax.experimental.pallas import tpu as pltpu


def make_residual_block_kernel(T, C, Cc, K, dilation):
    PAD = dilation * (K - 1) // 2
    f32 = jnp.float32
    bf16 = jnp.bfloat16

    def kernel(x_ref, cond_ref, step_ref,
               ws_ref, bs_ref,        # step 1x1 conv        : [C, C] bf16, [C, 1] f32
               wstk_ref, bstk_ref,    # cond + K taps fused  : [2C, Cc+K*C] bf16, [2C, 1] f32
               wp2_ref, bp2_ref,      # folded projection    : [2C, 2C] bf16, [2C, 1] f32
               out_ref, skip_ref):    # outputs              : [1, C, T] f32 each
        x = x_ref[0]        # [C, T]  bf16
        cond = cond_ref[0]  # [Cc, T] bf16
        stp = step_ref[0]   # [C, T]  bf16
        xf = x.astype(f32)

        # step 1x1 conv + residual add (bf16 MXU matmul, f32 accumulate)
        h = xf + bs_ref[...] + jnp.dot(ws_ref[...], stp,
                                       preferred_element_type=f32)     # [C, T] f32

        # zero padding along the time (lane) axis for the dilated taps
        if PAD > 0:
            zpad = jnp.zeros((C, PAD), f32)
            hp = jnp.concatenate([zpad, h, zpad], axis=1)               # [C, T+2*PAD]
        else:
            hp = h

        # One deep matmul for condition conv + all K dilated taps:
        #   stacked = [cond ; win_0 ; ... ; win_{K-1}],  win_j[:, t] = h[:, t + j*dil - PAD]
        # (concats built in f32, cast to bf16 once for the MXU)
        wins = [hp[:, j * dilation: j * dilation + T] for j in range(K)]
        stacked = jnp.concatenate([cond.astype(f32)] + wins,
                                  axis=0).astype(bf16)                  # [Cc+K*C, T]
        acc = (jnp.dot(wstk_ref[...], stacked, preferred_element_type=f32)
               + bstk_ref[...])                                         # [2C, T] f32

        # Fused_Gate: tanh(first half) * sigmoid(second half)  (f32 VPU/EUP)
        gate = jnp.tanh(acc[:C]) * jax.nn.sigmoid(acc[C:])              # [C, T] f32

        # folded projection: [res ; skip] = Wp' @ [gate ; x] + bp'
        # (residual add + 1/sqrt(2) baked into Wp'/bp' host-side)
        gx = jnp.concatenate([gate, xf], axis=0).astype(bf16)           # [2C, T]
        proj = (jnp.dot(wp2_ref[...], gx, preferred_element_type=f32)
                + bp2_ref[...])                                         # [2C, T] f32

        out_ref[0] = proj[:C]      # (Wp_r @ gate + b_r + x) / sqrt(2)
        skip_ref[0] = proj[C:]     #  Wp_s @ gate + b_s

    return kernel


def _vmem_limit_bytes(C, Cc, T, K, PAD):
    """Itemized working-set estimate with (sublane, lane) layout round-up."""
    def rup(n, m):
        return -(-int(n) // m) * m
    laneT, laneTp = rup(T, 128), rup(T + 2 * PAD, 128)
    F, BF = 4, 2
    depth = Cc + K * C
    sub = rup
    # double-buffered activation blocks: bf16 in (x, steps, cond), f32 out (res, skip)
    acts = 2 * ((2 * sub(C, 16) + sub(Cc, 16)) * laneT * BF
                + 2 * sub(C, 8) * laneT * F)
    # weights + biases (assume the pipeline double-buffers them too)
    wts = 2 * ((sub(C, 16) * rup(C, 128) + sub(2 * C, 16) * rup(depth, 128)
                + sub(2 * C, 16) * rup(2 * C, 128)) * BF
               + (sub(C, 8) + 2 * sub(2 * C, 8)) * 128 * F)
    # live in-kernel temporaries: h, padded h, K windows, stacked (f32 + bf16 cast),
    # acc, gate, [gate;x] (f32 + bf16 cast), proj
    tmps = ((sub(C, 8) * (laneT + laneTp + K * laneT)
             + sub(depth, 8) * laneT
             + 2 * sub(2 * C, 8) * laneT
             + sub(C, 8) * laneT
             + sub(2 * C, 8) * laneT) * F
            + (sub(depth, 16) + sub(2 * C, 16)) * laneT * BF)
    est = 2 * (acts + wts + tmps)          # 2x headroom for compiler scratch
    try:
        cap = int(0.75 * pltpu.get_tpu_info().vmem_capacity_bytes)
    except Exception:
        cap = 48 * 1024 * 1024             # safe even on v7x (64 MiB physical)
    return max(min(est, cap), 8 * 1024 * 1024)


def residual_block_pallas(x_ncw, cond_ncw, step_ncw, params, kernel_size, dilation):
    """x_ncw: [B, C, T], cond_ncw: [B, Cc, T], step_ncw: [B, C, T] (PyTorch NCW)."""
    B, C, T = x_ncw.shape
    Cc = cond_ncw.shape[1]
    K = kernel_size
    PAD = dilation * (K - 1) // 2
    # 'same'-padding construction only matches PyTorch when dilation*(K-1) is even.
    assert dilation * (K - 1) % 2 == 0, "requires dilation*(kernel_size-1) even (odd kernel)"

    f32, bf16 = jnp.float32, jnp.bfloat16
    inv_sqrt2 = 1.0 / math.sqrt(2.0)

    # --- activations: NCW kept as-is, just cast to bf16 (no wrapper transposes) ---
    x_in = x_ncw.astype(bf16)
    c_in = cond_ncw.astype(bf16)
    s_in = step_ncw.astype(bf16)

    # --- weights: Conv1d already stores [Cout, Cin, k] -> matmul orientation directly ---
    ws = params['w_step'][:, :, 0].astype(bf16)                          # [C, C]
    bs = params['b_step'].astype(f32).reshape(C, 1)                      # [C, 1]

    # condition conv + K dilated taps fused along the contraction axis
    wc = params['w_cond'][:, :, 0]                                       # [2C, Cc]
    wk = [params['w_conv'][:, :, j] for j in range(K)]                   # K x [2C, C]
    wstk = jnp.concatenate([wc] + wk, axis=1).astype(bf16)               # [2C, Cc + K*C]
    bstk = (params['b_cond'] + params['b_conv']).astype(f32).reshape(2 * C, 1)

    # projection with residual add + 1/sqrt(2) + res/skip split folded in
    wp = params['w_proj'][:, :, 0].astype(f32)                           # [2C, C]
    top = jnp.concatenate([wp[:C] * inv_sqrt2, jnp.eye(C, dtype=f32) * inv_sqrt2], axis=1)
    bot = jnp.concatenate([wp[C:], jnp.zeros((C, C), f32)], axis=1)
    wp2 = jnp.concatenate([top, bot], axis=0).astype(bf16)               # [2C, 2C]
    bp2 = jnp.concatenate([params['b_proj'][:C] * inv_sqrt2,
                           params['b_proj'][C:]]).astype(f32).reshape(2 * C, 1)

    kernel = make_residual_block_kernel(T, C, Cc, K, dilation)

    def const_spec(shape):
        n = len(shape)
        return pl.BlockSpec(shape, lambda b: (0,) * n)

    def act_spec(ch):
        return pl.BlockSpec((1, ch, T), lambda b: (b, 0, 0))

    out_sds = jax.ShapeDtypeStruct((B, C, T), f32)

    out, skips = pl.pallas_call(
        kernel,
        out_shape=(out_sds, out_sds),
        grid=(B,),
        in_specs=[
            act_spec(C),                                              # x
            act_spec(Cc),                                             # conditions
            act_spec(C),                                              # steps
            const_spec((C, C)), const_spec((C, 1)),                   # step conv
            const_spec((2 * C, Cc + K * C)), const_spec((2 * C, 1)),  # cond + taps (fused)
            const_spec((2 * C, 2 * C)), const_spec((2 * C, 1)),       # folded projection
        ],
        out_specs=(act_spec(C), act_spec(C)),
        compiler_params=pltpu.CompilerParams(
            dimension_semantics=("parallel",),
            vmem_limit_bytes=_vmem_limit_bytes(C, Cc, T, K, PAD)),
    )(x_in, c_in, s_in, ws, bs, wstk, bstk, wp2, bp2)

    return out, skips


def residual_block_reference(x, conditions, steps, params, kernel_size, dilation):
    """Pure-JAX NCW reference matching the PyTorch module exactly (f32)."""
    C = x.shape[1]
    pad = dilation * (kernel_size - 1) // 2

    def conv1x1(inp, w, b):  # w: [O, I, 1]
        return jnp.einsum('bit,oi->bot', inp, w[:, :, 0]) + b[None, :, None]

    residuals = x
    cond = conv1x1(conditions, params['w_cond'], params['b_cond'])
    st = conv1x1(steps, params['w_step'], params['b_step'])
    h = x + st
    conv = lax.conv_general_dilated(
        h, params['w_conv'], window_strides=(1,), padding=[(pad, pad)],
        rhs_dilation=(dilation,), dimension_numbers=('NCH', 'OIH', 'NCH'))
    conv = conv + params['b_conv'][None, :, None] + cond
    x_t, x_s = conv[:, :C, :], conv[:, C:, :]
    g = jnp.tanh(x_t) * jax.nn.sigmoid(x_s)
    proj = conv1x1(g, params['w_proj'], params['b_proj'])
    out, skips = proj[:, :C, :], proj[:, C:, :]
    return (out + residuals) / math.sqrt(2.0), skips


if __name__ == "__main__":
    B, C, Cc, T = 2, 8, 12, 16          # batch, in_channels, condition_channels, time
    K, DIL = 3, 2                       # kernel_size, dilation

    key = jax.random.PRNGKey(0)
    keys = jax.random.split(key, 12)

    # deterministic synthetic parameters (shapes from Residual_Block.__init__)
    params = {
        'w_cond': 0.1 * jax.random.normal(keys[0], (2 * C, Cc, 1), jnp.float32),
        'b_cond': 0.1 * jax.random.normal(keys[1], (2 * C,), jnp.float32),
        'w_step': 0.1 * jax.random.normal(keys[2], (C, C, 1), jnp.float32),
        'b_step': 0.1 * jax.random.normal(keys[3], (C,), jnp.float32),
        'w_conv': 0.1 * jax.random.normal(keys[4], (2 * C, C, K), jnp.float32),
        'b_conv': 0.1 * jax.random.normal(keys[5], (2 * C,), jnp.float32),
        'w_proj': 0.1 * jax.random.normal(keys[6], (2 * C, C, 1), jnp.float32),
        'b_proj': 0.1 * jax.random.normal(keys[7], (2 * C,), jnp.float32),
    }

    x = jax.random.normal(keys[8], (B, C, T), jnp.float32)
    conditions = jax.random.normal(keys[9], (B, Cc, T), jnp.float32)
    steps = jax.random.normal(keys[10], (B, C, T), jnp.float32)

    run = jax.jit(functools.partial(residual_block_pallas,
                                    kernel_size=K, dilation=DIL))
    out, skips = run(x, conditions, steps, params)
    jax.block_until_ready((out, skips))

    # Reference at the kernel's input precision (inputs/weights rounded to bf16,
    # math in f32) — isolates the kernel's own small internal rounding (bf16 MXU
    # operands with f32 accumulation).
    q = lambda a: a.astype(jnp.bfloat16).astype(jnp.float32)
    qparams = jax.tree_util.tree_map(q, params)
    out_ref, skips_ref = residual_block_reference(q(x), q(conditions), q(steps),
                                                  qparams, K, DIL)

    assert out.shape == (B, C, T) and skips.shape == (B, C, T)
    assert jnp.allclose(out, out_ref, atol=3e-2, rtol=3e-2), "residual output mismatch"
    assert jnp.allclose(skips, skips_ref, atol=3e-2, rtol=3e-2), "skip output mismatch"

    print("KERNEL_OK")
</pallas_src>

<mosaic_0001>
module attributes {stable_mosaic.version = 11 : i64} {
  func.func @kernel(%arg0: i32, %arg1: memref<1x8x16xbf16, #tpu.memory_space<vmem>>, %arg2: memref<1x12x16xbf16, #tpu.memory_space<vmem>>, %arg3: memref<1x8x16xbf16, #tpu.memory_space<vmem>>, %arg4: memref<8x8xbf16, #tpu.memory_space<vmem>>, %arg5: memref<8x1xf32, #tpu.memory_space<vmem>>, %arg6: memref<16x36xbf16, #tpu.memory_space<vmem>>, %arg7: memref<16x1xf32, #tpu.memory_space<vmem>>, %arg8: memref<16x16xbf16, #tpu.memory_space<vmem>>, %arg9: memref<16x1xf32, #tpu.memory_space<vmem>>, %arg10: memref<1x8x16xf32, #tpu.memory_space<vmem>>, %arg11: memref<1x8x16xf32, #tpu.memory_space<vmem>>) attributes {dimension_semantics = [#tpu.dimension_semantics<parallel>], iteration_bounds = array<i64: 2>, scalar_prefetch = 0 : i64, scratch_operands = 0 : i64, tpu.core_type = #tpu.core_type<tc>, window_params = [{transform_indices = @transform_0, window_bounds = array<i64: 1, 8, 16>}, {transform_indices = @transform_1, window_bounds = array<i64: 1, 12, 16>}, {transform_indices = @transform_2, window_bounds = array<i64: 1, 8, 16>}, {pipeline_mode = #tpu.pipeline_mode<synchronous>, transform_indices = @transform_3, window_bounds = array<i64: 8, 8>}, {pipeline_mode = #tpu.pipeline_mode<synchronous>, transform_indices = @transform_4, window_bounds = array<i64: 8, 1>}, {pipeline_mode = #tpu.pipeline_mode<synchronous>, transform_indices = @transform_5, window_bounds = array<i64: 16, 36>}, {pipeline_mode = #tpu.pipeline_mode<synchronous>, transform_indices = @transform_6, window_bounds = array<i64: 16, 1>}, {pipeline_mode = #tpu.pipeline_mode<synchronous>, transform_indices = @transform_7, window_bounds = array<i64: 16, 16>}, {pipeline_mode = #tpu.pipeline_mode<synchronous>, transform_indices = @transform_8, window_bounds = array<i64: 16, 1>}, {transform_indices = @transform_9, window_bounds = array<i64: 1, 8, 16>}, {transform_indices = @transform_10, window_bounds = array<i64: 1, 8, 16>}]} {
    %c0 = arith.constant 0 : index
    %c0_0 = arith.constant 0 : index
    %c0_1 = arith.constant 0 : index
    %0 = vector.load %arg1[%c0, %c0_0, %c0_1] : memref<1x8x16xbf16, #tpu.memory_space<vmem>>, vector<1x8x16xbf16>
    %1 = vector.shape_cast %0 : vector<1x8x16xbf16> to vector<8x16xbf16>
    %c0_2 = arith.constant 0 : index
    %c0_3 = arith.constant 0 : index
    %c0_4 = arith.constant 0 : index
    %2 = vector.load %arg2[%c0_2, %c0_3, %c0_4] : memref<1x12x16xbf16, #tpu.memory_space<vmem>>, vector<1x12x16xbf16>
    %3 = vector.shape_cast %2 : vector<1x12x16xbf16> to vector<12x16xbf16>
    %c0_5 = arith.constant 0 : index
    %c0_6 = arith.constant 0 : index
    %c0_7 = arith.constant 0 : index
    %4 = vector.load %arg3[%c0_5, %c0_6, %c0_7] : memref<1x8x16xbf16, #tpu.memory_space<vmem>>, vector<1x8x16xbf16>
    %5 = vector.shape_cast %4 : vector<1x8x16xbf16> to vector<8x16xbf16>
    %6 = arith.extf %1 : vector<8x16xbf16> to vector<8x16xf32>
    %c0_8 = arith.constant 0 : index
    %c0_9 = arith.constant 0 : index
    %7 = vector.load %arg5[%c0_8, %c0_9] : memref<8x1xf32, #tpu.memory_space<vmem>>, vector<8x1xf32>
    %8 = vector.broadcast %7 : vector<8x1xf32> to vector<8x16xf32>
    %9 = arith.addf %6, %8 : vector<8x16xf32>
    %c0_10 = arith.constant 0 : index
    %c0_11 = arith.constant 0 : index
    %10 = vector.load %arg4[%c0_10, %c0_11] : memref<8x8xbf16, #tpu.memory_space<vmem>>, vector<8x8xbf16>
    %cst = arith.constant dense<0.000000e+00> : vector<8x16xf32>
    %11 = tpu.matmul %10, %5, %cst {dimension_numbers = #tpu.dot_dimension_numbers<[1], [0], [0], [1], [0, 0, 1, 1], [], []>} : vector<8x8xbf16>, vector<8x16xbf16>, vector<8x16xf32> -> vector<8x16xf32>
    %12 = arith.addf %9, %11 : vector<8x16xf32>
    %cst_12 = arith.constant 0.000000e+00 : f32
    %13 = vector.broadcast %cst_12 : f32 to vector<8x2xf32>
    %14 = tpu.concatenate %13, %12, %13 in 1 : vector<8x2xf32>, vector<8x16xf32>, vector<8x2xf32> -> vector<8x20xf32>
    %15 = vector.extract_strided_slice %14 {offsets = [0, 0], sizes = [8, 16], strides = [1, 1]} : vector<8x20xf32> to vector<8x16xf32>
    %16 = vector.extract_strided_slice %14 {offsets = [0, 2], sizes = [8, 16], strides = [1, 1]} : vector<8x20xf32> to vector<8x16xf32>
    %17 = vector.extract_strided_slice %14 {offsets = [0, 4], sizes = [8, 16], strides = [1, 1]} : vector<8x20xf32> to vector<8x16xf32>
    %18 = arith.extf %3 : vector<12x16xbf16> to vector<12x16xf32>
    %19 = tpu.concatenate %18, %15, %16, %17 in 0 : vector<12x16xf32>, vector<8x16xf32>, vector<8x16xf32>, vector<8x16xf32> -> vector<36x16xf32>
    %20 = arith.truncf %19 : vector<36x16xf32> to vector<36x16xbf16>
    %c0_13 = arith.constant 0 : index
    %c0_14 = arith.constant 0 : index
    %21 = vector.load %arg6[%c0_13, %c0_14] : memref<16x36xbf16, #tpu.memory_space<vmem>>, vector<16x36xbf16>
    %cst_15 = arith.constant dense<0.000000e+00> : vector<16x16xf32>
    %22 = tpu.matmul %21, %20, %cst_15 {dimension_numbers = #tpu.dot_dimension_numbers<[1], [0], [0], [1], [0, 0, 1, 1], [], []>} : vector<16x36xbf16>, vector<36x16xbf16>, vector<16x16xf32> -> vector<16x16xf32>
    %c0_16 = arith.constant 0 : index
    %c0_17 = arith.constant 0 : index
    %23 = vector.load %arg7[%c0_16, %c0_17] : memref<16x1xf32, #tpu.memory_space<vmem>>, vector<16x1xf32>
    %24 = vector.broadcast %23 : vector<16x1xf32> to vector<16x16xf32>
    %25 = arith.addf %22, %24 : vector<16x16xf32>
    %26 = vector.extract_strided_slice %25 {offsets = [0, 0], sizes = [8, 16], strides = [1, 1]} : vector<16x16xf32> to vector<8x16xf32>
    %27 = math.tanh %26 : vector<8x16xf32>
    %28 = vector.extract_strided_slice %25 {offsets = [8, 0], sizes = [8, 16], strides = [1, 1]} : vector<16x16xf32> to vector<8x16xf32>
    %29 = arith.negf %28 : vector<8x16xf32>
    %30 = math.exp %29 : vector<8x16xf32>
    %cst_18 = arith.constant 1.000000e+00 : f32
    %31 = vector.broadcast %cst_18 : f32 to vector<8x16xf32>
    %32 = arith.addf %31, %30 : vector<8x16xf32>
    %33 = arith.divf %31, %32 : vector<8x16xf32>
    %34 = arith.mulf %27, %33 : vector<8x16xf32>
    %35 = tpu.concatenate %34, %6 in 0 : vector<8x16xf32>, vector<8x16xf32> -> vector<16x16xf32>
    %36 = arith.truncf %35 : vector<16x16xf32> to vector<16x16xbf16>
    %c0_19 = arith.constant 0 : index
    %c0_20 = arith.constant 0 : index
    %37 = vector.load %arg8[%c0_19, %c0_20] : memref<16x16xbf16, #tpu.memory_space<vmem>>, vector<16x16xbf16>
    %cst_21 = arith.constant dense<0.000000e+00> : vector<16x16xf32>
    %38 = tpu.matmul %37, %36, %cst_21 {dimension_numbers = #tpu.dot_dimension_numbers<[1], [0], [0], [1], [0, 0, 1, 1], [], []>} : vector<16x16xbf16>, vector<16x16xbf16>, vector<16x16xf32> -> vector<16x16xf32>
    %c0_22 = arith.constant 0 : index
    %c0_23 = arith.constant 0 : index
    %39 = vector.load %arg9[%c0_22, %c0_23] : memref<16x1xf32, #tpu.memory_space<vmem>>, vector<16x1xf32>
    %40 = vector.broadcast %39 : vector<16x1xf32> to vector<16x16xf32>
    %41 = arith.addf %38, %40 : vector<16x16xf32>
    %42 = vector.extract_strided_slice %41 {offsets = [0, 0], sizes = [8, 16], strides = [1, 1]} : vector<16x16xf32> to vector<8x16xf32>
    %c0_24 = arith.constant 0 : index
    %c0_25 = arith.constant 0 : index
    %c0_26 = arith.constant 0 : index
    %43 = vector.load %arg10[%c0_24, %c0_25, %c0_26] : memref<1x8x16xf32, #tpu.memory_space<vmem>>, vector<1x8x16xf32>
    %44 = vector.shape_cast %43 : vector<1x8x16xf32> to vector<8x16xf32>
    %45 = vector.shape_cast %42 : vector<8x16xf32> to vector<1x8x16xf32>
    tpu.vector_store %arg10[%c0_24, %c0_25, %c0_26], %45 {strides = array<i32>} : memref<1x8x16xf32, #tpu.memory_space<vmem>>, vector<1x8x16xf32>,
    %46 = vector.extract_strided_slice %41 {offsets = [8, 0], sizes = [8, 16], strides = [1, 1]} : vector<16x16xf32> to vector<8x16xf32>
    %c0_27 = arith.constant 0 : index
    %c0_28 = arith.constant 0 : index
    %c0_29 = arith.constant 0 : index
    %47 = vector.load %arg11[%c0_27, %c0_28, %c0_29] : memref<1x8x16xf32, #tpu.memory_space<vmem>>, vector<1x8x16xf32>
    %48 = vector.shape_cast %47 : vector<1x8x16xf32> to vector<8x16xf32>
    %49 = vector.shape_cast %46 : vector<8x16xf32> to vector<1x8x16xf32>
    tpu.vector_store %arg11[%c0_27, %c0_28, %c0_29], %49 {strides = array<i32>} : memref<1x8x16xf32, #tpu.memory_space<vmem>>, vector<1x8x16xf32>,
    return
  }
  func.func @transform_0(%arg0: i32) -> (i32, i32, i32) {
    %c0_i32 = arith.constant 0 : i32
    %c0_i32_0 = arith.constant 0 : i32
    %c0_i32_1 = arith.constant 0 : i32
    return %arg0, %c0_i32, %c0_i32_0 : i32, i32, i32
  }
  func.func @transform_1(%arg0: i32) -> (i32, i32, i32) {
    %c0_i32 = arith.constant 0 : i32
    %c0_i32_0 = arith.constant 0 : i32
    %c0_i32_1 = arith.constant 0 : i32
    return %arg0, %c0_i32, %c0_i32_0 : i32, i32, i32
  }
  func.func @transform_2(%arg0: i32) -> (i32, i32, i32) {
    %c0_i32 = arith.constant 0 : i32
    %c0_i32_0 = arith.constant 0 : i32
    %c0_i32_1 = arith.constant 0 : i32
    return %arg0, %c0_i32, %c0_i32_0 : i32, i32, i32
  }
  func.func @transform_3(%arg0: i32) -> (i32, i32) {
    %c0_i32 = arith.constant 0 : i32
    %c0_i32_0 = arith.constant 0 : i32
    %c0_i32_1 = arith.constant 0 : i32
    return %c0_i32, %c0_i32_0 : i32, i32
  }
  func.func @transform_4(%arg0: i32) -> (i32, i32) {
    %c0_i32 = arith.constant 0 : i32
    %c0_i32_0 = arith.constant 0 : i32
    %c0_i32_1 = arith.constant 0 : i32
    return %c0_i32, %c0_i32_0 : i32, i32
  }
  func.func @transform_5(%arg0: i32) -> (i32, i32) {
    %c0_i32 = arith.constant 0 : i32
    %c0_i32_0 = arith.constant 0 : i32
    %c0_i32_1 = arith.constant 0 : i32
    return %c0_i32, %c0_i32_0 : i32, i32
  }
  func.func @transform_6(%arg0: i32) -> (i32, i32) {
    %c0_i32 = arith.constant 0 : i32
    %c0_i32_0 = arith.constant 0 : i32
    %c0_i32_1 = arith.constant 0 : i32
    return %c0_i32, %c0_i32_0 : i32, i32
  }
  func.func @transform_7(%arg0: i32) -> (i32, i32) {
    %c0_i32 = arith.constant 0 : i32
    %c0_i32_0 = arith.constant 0 : i32
    %c0_i32_1 = arith.constant 0 : i32
    return %c0_i32, %c0_i32_0 : i32, i32
  }
  func.func @transform_8(%arg0: i32) -> (i32, i32) {
    %c0_i32 = arith.constant 0 : i32
    %c0_i32_0 = arith.constant 0 : i32
    %c0_i32_1 = arith.constant 0 : i32
    return %c0_i32, %c0_i32_0 : i32, i32
  }
  func.func @transform_9(%arg0: i32) -> (i32, i32, i32) {
    %c0_i32 = arith.constant 0 : i32
    %c0_i32_0 = arith.constant 0 : i32
    %c0_i32_1 = arith.constant 0 : i32
    return %arg0, %c0_i32, %c0_i32_0 : i32, i32, i32
  }
  func.func @transform_10(%arg0: i32) -> (i32, i32, i32) {
    %c0_i32 = arith.constant 0 : i32
    %c0_i32_0 = arith.constant 0 : i32
    %c0_i32_1 = arith.constant 0 : i32
    return %arg0, %c0_i32, %c0_i32_0 : i32, i32, i32
  }
}

</mosaic_0001>

<llo_original>
// kernel: residual_block_pallas.1
$region0: #{residual_block_pallas.1}
  #allocation0 [shape = 'u32[]', space=smem, size = 0x4, offset = 0x4, fixed_abs, tag = 'smem constant byte address 0x4 - core index']
  #allocation1 [shape = 'u32[144,128]{1,0:T(1,128)}', space=vmem, size = 0x12000, scoped, tag = 'internal scratch']
  %s0 = inlined_call_operand.vmem [shape: bf16[2,8,16], index: 0, kind: input, shape index: {}]
  %s1 = inlined_call_operand.vmem [shape: bf16[2,12,16], index: 1, kind: input, shape index: {}]
  %s2 = inlined_call_operand.vmem [shape: bf16[2,8,16], index: 2, kind: input, shape index: {}]
  %s3 = inlined_call_operand.vmem [shape: bf16[8,8], index: 3, kind: input, shape index: {}]
  %s4 = inlined_call_operand.vmem [shape: f32[8,1], index: 4, kind: input, shape index: {}]
  %s5 = inlined_call_operand.vmem [shape: bf16[16,36], index: 5, kind: input, shape index: {}]
  %s6 = inlined_call_operand.vmem [shape: f32[16,1], index: 6, kind: input, shape index: {}]
  %s7 = inlined_call_operand.vmem [shape: bf16[16,16], index: 7, kind: input, shape index: {}]
  %s8 = inlined_call_operand.vmem [shape: f32[16,1], index: 8, kind: input, shape index: {}]
  %s9 = inlined_call_operand.hbm [shape: f32[2,8,16], index: 9, kind: output, shape index: {0}]
  %s10 = inlined_call_operand.hbm [shape: f32[2,8,16], index: 10, kind: output, shape index: {1}]
  %11 = xla_tuple %s9, %s10
  %s12 = sld [smem:[#allocation0]]
  $region77: #{residual_block_pallas.1} parent=0
    _
  %s14 = ssub.s32 1, %s12
  %s15 = scalar_select 0, %s14, %s12
  $region1: #{residual_block_pallas.1} parent=0
    #allocation2 [shape = 'u8[8192]{0}', space=vmem, size = 0x2000, scoped, tag = 'output window, operand 0']
    #allocation3 [shape = 's32[2]{0}', space=sflag, size = 0x8, scoped, tag = 'scoped memory for residual_block_pallas.1']
    #allocation4 [shape = 'u8[8192]{0}', space=vmem, size = 0x2000, scoped, tag = 'output window, operand 1']
    #allocation5 [shape = 's32[2]{0}', space=sflag, size = 0x8, scoped, tag = 'scoped memory for residual_block_pallas.1']
    %16 = vsyncpa [#allocation3], 0
    %s17 = scalar_lea.sflag [#allocation3], 1
    %18 = vsyncpa %s17, 0
    %19 = vsyncpa [#allocation5], 0
    %s20 = scalar_lea.sflag [#allocation5], 1
    %21 = vsyncpa %s20, 0
    loop: start=0, step=1, limit=4
    $region2: #{residual_block_pallas.1} parent=1 // loop_pre_header
      _
    $region3: #{residual_block_pallas.1} parent=1 // loop_header
      %s23 = sphi 0, %s27
      %p24 = scmp.ge.s32.totalorder %s23, 4
      %s33 = sphi 0, %s35
      %s36 = sphi 0, %s33
      %s37 = sphi 0, %s36
      %s53 = sphi 0, %s37
      %s59 = sphi 0, %s61
      %s62 = sphi 0, %s59
      %s63 = sphi 0, %s62
      %s79 = sphi 0, %s63
      %s85 = sphi 0, %s87
      %s88 = sphi 0, %s85
      %s89 = sphi 0, %s88
      %s105 = sphi 0, %s89
      %s109 = sphi 0, %s109
      %s111 = sphi 0, %s109
      %s112 = sphi 0, %s111
      %s126 = sphi 0, %s112
      %s130 = sphi 0, %s130
      %s132 = sphi 0, %s130
      %s133 = sphi 0, %s132
      %s147 = sphi 0, %s133
      %s151 = sphi 0, %s151
      %s153 = sphi 0, %s151
      %s154 = sphi 0, %s153
      %s168 = sphi 0, %s154
      %s172 = sphi 0, %s172
      %s174 = sphi 0, %s172
      %s175 = sphi 0, %s174
      %s189 = sphi 0, %s175
      %s193 = sphi 0, %s193
      %s195 = sphi 0, %s193
      %s196 = sphi 0, %s195
      %s210 = sphi 0, %s196
      %s214 = sphi 0, %s214
      %s216 = sphi 0, %s214
      %s217 = sphi 0, %s216
      %s231 = sphi 0, %s217
      %s237 = sphi 0, %s239
      %s240 = sphi 0, %s237
      %s241 = sphi 0, %s240
      %s257 = sphi 0, %s241
      %s263 = sphi 0, %s265
      %s266 = sphi 0, %s263
      %s267 = sphi 0, %s266
      %s283 = sphi 0, %s267
    $region4: #{residual_block_pallas.1} parent=1 // loop_header_branch
      %26 = sbr.rel (%p24) target = $region8
    $region5: #{residual_block_pallas.1} parent=1 // loop_body
      %s28 = ssub.s32 %s23, 1
      %s29 = ssub.s32 %s23, 2
      %s30 = sadd.s32 %s23, 1
      %s31 = ssub.s32 %s23, %s30
      %p32 = scmp.eq.s32.totalorder %s31, 0
      %s34 = sadd.s32 %s33, 1
      %s35 = scalar_select %p32, %s33, %s34
      %p38 = pneg %p32
      %p39 = scmp.eq.s32.totalorder %s23, 1
      %p40 = por %p38, %p39
      %p41 = scmp.ne.s32.totalorder %s33, %s36
      %p42 = scmp.eq.s32.totalorder %s23, 0
      %p43 = por %p41, %p42
      %p44 = scmp.ne.s32.totalorder %s33, %s36
      %p45 = scmp.eq.s32.totalorder %s28, 1
      %p46 = por %p44, %p45
      %p47 = scmp.ne.s32.totalorder %s36, %s37
      %p48 = scmp.eq.s32.totalorder %s28, 0
      %p49 = por %p47, %p48
      %p50 = scmp.ne.s32.totalorder %s36, %s37
      %p51 = scmp.eq.s32.totalorder %s29, 1
      %p52 = por %p50, %p51
      %p54 = scmp.ne.s32.totalorder %s37, %s53
      %p55 = scmp.eq.s32.totalorder %s29, 0
      %p56 = por %p54, %p55
      %s57 = ssub.s32 %s23, %s30
      %p58 = scmp.eq.s32.totalorder %s57, 0
      %s60 = sadd.s32 %s59, 1
      %s61 = scalar_select %p58, %s59, %s60
      %p64 = pneg %p58
      %p65 = scmp.eq.s32.totalorder %s23, 1
      %p66 = por %p64, %p65
      %p67 = scmp.ne.s32.totalorder %s59, %s62
      %p68 = scmp.eq.s32.totalorder %s23, 0
      %p69 = por %p67, %p68
      %p70 = scmp.ne.s32.totalorder %s59, %s62
      %p71 = scmp.eq.s32.totalorder %s28, 1
      %p72 = por %p70, %p71
      %p73 = scmp.ne.s32.totalorder %s62, %s63
      %p74 = scmp.eq.s32.totalorder %s28, 0
      %p75 = por %p73, %p74
      %p76 = scmp.ne.s32.totalorder %s62, %s63
      %p77 = scmp.eq.s32.totalorder %s29, 1
      %p78 = por %p76, %p77
      %p80 = scmp.ne.s32.totalorder %s63, %s79
      %p81 = scmp.eq.s32.totalorder %s29, 0
      %p82 = por %p80, %p81
      %s83 = ssub.s32 %s23, %s30
      %p84 = scmp.eq.s32.totalorder %s83, 0
      %s86 = sadd.s32 %s85, 1
      %s87 = scalar_select %p84, %s85, %s86
      %p90 = pneg %p84
      %p91 = scmp.eq.s32.totalorder %s23, 1
      %p92 = por %p90, %p91
      %p93 = scmp.ne.s32.totalorder %s85, %s88
      %p94 = scmp.eq.s32.totalorder %s23, 0
      %p95 = por %p93, %p94
      %p96 = scmp.ne.s32.totalorder %s85, %s88
      %p97 = scmp.eq.s32.totalorder %s28, 1
      %p98 = por %p96, %p97
      %p99 = scmp.ne.s32.totalorder %s88, %s89
      %p100 = scmp.eq.s32.totalorder %s28, 0
      %p101 = por %p99, %p100
      %p102 = scmp.ne.s32.totalorder %s88, %s89
      %p103 = scmp.eq.s32.totalorder %s29, 1
      %p104 = por %p102, %p103
      %p106 = scmp.ne.s32.totalorder %s89, %s105
      %p107 = scmp.eq.s32.totalorder %s29, 0
      %p108 = por %p106, %p107
      %s110 = sadd.s32 %s109, 1
      %p113 = scmp.eq.s32.totalorder %s23, 1
      %p114 = scmp.ne.s32.totalorder %s109, %s111
      %p115 = scmp.eq.s32.totalorder %s23, 0
      %p116 = por %p114, %p115
      %p117 = scmp.ne.s32.totalorder %s109, %s111
      %p118 = scmp.eq.s32.totalorder %s28, 1
      %p119 = por %p117, %p118
      %p120 = scmp.ne.s32.totalorder %s111, %s112
      %p121 = scmp.eq.s32.totalorder %s28, 0
      %p122 = por %p120, %p121
      %p123 = scmp.ne.s32.totalorder %s111, %s112
      %p124 = scmp.eq.s32.totalorder %s29, 1
      %p125 = por %p123, %p124
      %p127 = scmp.ne.s32.totalorder %s112, %s126
      %p128 = scmp.eq.s32.totalorder %s29, 0
      %p129 = por %p127, %p128
      %s131 = sadd.s32 %s130, 1
      %p134 = scmp.eq.s32.totalorder %s23, 1
      %p135 = scmp.ne.s32.totalorder %s130, %s132
      %p136 = scmp.eq.s32.totalorder %s23, 0
      %p137 = por %p135, %p136
      %p138 = scmp.ne.s32.totalorder %s130, %s132
      %p139 = scmp.eq.s32.totalorder %s28, 1
      %p140 = por %p138, %p139
      %p141 = scmp.ne.s32.totalorder %s132, %s133
      %p142 = scmp.eq.s32.totalorder %s28, 0
      %p143 = por %p141, %p142
      %p144 = scmp.ne.s32.totalorder %s132, %s133
      %p145 = scmp.eq.s32.totalorder %s29, 1
      %p146 = por %p144, %p145
      %p148 = scmp.ne.s32.totalorder %s133, %s147
      %p149 = scmp.eq.s32.totalorder %s29, 0
      %p150 = por %p148, %p149
      %s152 = sadd.s32 %s151, 1
      %p155 = scmp.eq.s32.totalorder %s23, 1
      %p156 = scmp.ne.s32.totalorder %s151, %s153
      %p157 = scmp.eq.s32.totalorder %s23, 0
      %p158 = por %p156, %p157
      %p159 = scmp.ne.s32.totalorder %s151, %s153
      %p160 = scmp.eq.s32.totalorder %s28, 1
      %p161 = por %p159, %p160
      %p162 = scmp.ne.s32.totalorder %s153, %s154
      %p163 = scmp.eq.s32.totalorder %s28, 0
      %p164 = por %p162, %p163
      %p165 = scmp.ne.s32.totalorder %s153, %s154
      %p166 = scmp.eq.s32.totalorder %s29, 1
      %p167 = por %p165, %p166
      %p169 = scmp.ne.s32.totalorder %s154, %s168
      %p170 = scmp.eq.s32.totalorder %s29, 0
      %p171 = por %p169, %p170
      %s173 = sadd.s32 %s172, 1
      %p176 = scmp.eq.s32.totalorder %s23, 1
      %p177 = scmp.ne.s32.totalorder %s172, %s174
      %p178 = scmp.eq.s32.totalorder %s23, 0
      %p179 = por %p177, %p178
      %p180 = scmp.ne.s32.totalorder %s172, %s174
      %p181 = scmp.eq.s32.totalorder %s28, 1
      %p182 = por %p180, %p181
      %p183 = scmp.ne.s32.totalorder %s174, %s175
      %p184 = scmp.eq.s32.totalorder %s28, 0
      %p185 = por %p183, %p184
      %p186 = scmp.ne.s32.totalorder %s174, %s175
      %p187 = scmp.eq.s32.totalorder %s29, 1
      %p188 = por %p186, %p187
      %p190 = scmp.ne.s32.totalorder %s175, %s189
      %p191 = scmp.eq.s32.totalorder %s29, 0
      %p192 = por %p190, %p191
      %s194 = sadd.s32 %s193, 1
      %p197 = scmp.eq.s32.totalorder %s23, 1
      %p198 = scmp.ne.s32.totalorder %s193, %s195
      %p199 = scmp.eq.s32.totalorder %s23, 0
      %p200 = por %p198, %p199
      %p201 = scmp.ne.s32.totalorder %s193, %s195
      %p202 = scmp.eq.s32.totalorder %s28, 1
      %p203 = por %p201, %p202
      %p204 = scmp.ne.s32.totalorder %s195, %s196
      %p205 = scmp.eq.s32.totalorder %s28, 0
      %p206 = por %p204, %p205
      %p207 = scmp.ne.s32.totalorder %s195, %s196
      %p208 = scmp.eq.s32.totalorder %s29, 1
      %p209 = por %p207, %p208
      %p211 = scmp.ne.s32.totalorder %s196, %s210
      %p212 = scmp.eq.s32.totalorder %s29, 0
      %p213 = por %p211, %p212
      %s215 = sadd.s32 %s214, 1
      %p218 = scmp.eq.s32.totalorder %s23, 1
      %p219 = scmp.ne.s32.totalorder %s214, %s216
      %p220 = scmp.eq.s32.totalorder %s23, 0
      %p221 = por %p219, %p220
      %p222 = scmp.ne.s32.totalorder %s214, %s216
      %p223 = scmp.eq.s32.totalorder %s28, 1
      %p224 = por %p222, %p223
      %p225 = scmp.ne.s32.totalorder %s216, %s217
      %p226 = scmp.eq.s32.totalorder %s28, 0
      %p227 = por %p225, %p226
      %p228 = scmp.ne.s32.totalorder %s216, %s217
      %p229 = scmp.eq.s32.totalorder %s29, 1
      %p230 = por %p228, %p229
      %p232 = scmp.ne.s32.totalorder %s217, %s231
      %p233 = scmp.eq.s32.totalorder %s29, 0
      %p234 = por %p232, %p233
      %s235 = ssub.s32 %s23, %s30
      %p236 = scmp.eq.s32.totalorder %s235, 0
      %s238 = sadd.s32 %s237, 1
      %s239 = scalar_select %p236, %s237, %s238
      %p242 = pneg %p236
      %p243 = scmp.eq.s32.totalorder %s23, 1
      %p244 = por %p242, %p243
      %p245 = scmp.ne.s32.totalorder %s237, %s240
      %p246 = scmp.eq.s32.totalorder %s23, 0
      %p247 = por %p245, %p246
      %p248 = scmp.ne.s32.totalorder %s237, %s240
      %p249 = scmp.eq.s32.totalorder %s28, 1
      %p250 = por %p248, %p249
      %p251 = scmp.ne.s32.totalorder %s240, %s241
      %p252 = scmp.eq.s32.totalorder %s28, 0
      %p253 = por %p251, %p252
      %p254 = scmp.ne.s32.totalorder %s240, %s241
      %p255 = scmp.eq.s32.totalorder %s29, 1
      %p256 = por %p254, %p255
      %p258 = scmp.ne.s32.totalorder %s241, %s257
      %p259 = scmp.eq.s32.totalorder %s29, 0
      %p260 = por %p258, %p259
      %s261 = ssub.s32 %s23, %s30
      %p262 = scmp.eq.s32.totalorder %s261, 0
      %s264 = sadd.s32 %s263, 1
      %s265 = scalar_select %p262, %s263, %s264
      %p268 = pneg %p262
      %p269 = scmp.eq.s32.totalorder %s23, 1
      %p270 = por %p268, %p269
      %p271 = scmp.ne.s32.totalorder %s263, %s266
      %p272 = scmp.eq.s32.totalorder %s23, 0
      %p273 = por %p271, %p272
      %p274 = scmp.ne.s32.totalorder %s263, %s266
      %p275 = scmp.eq.s32.totalorder %s28, 1
      %p276 = por %p274, %p275
      %p277 = scmp.ne.s32.totalorder %s266, %s267
      %p278 = scmp.eq.s32.totalorder %s28, 0
      %p279 = por %p277, %p278
      %p280 = scmp.ne.s32.totalorder %s266, %s267
      %p281 = scmp.eq.s32.totalorder %s29, 1
      %p282 = por %p280, %p281
      %p284 = scmp.ne.s32.totalorder %s267, %s283
      %p285 = scmp.eq.s32.totalorder %s29, 0
      %p286 = por %p284, %p285
      %p287 = scmp.le.s32.totalorder 1, %s23
      %p288 = scmp.lt.s32.totalorder %s23, 3
      %p289 = pnand %p287, %p288
      %p290 = pneg %p289
      // Predicated region
      $region9: #{residual_block_pallas.1} parent=5 // pred_check
        _
      $region10: #{residual_block_pallas.1} parent=5 // pred_check_branch
        %292 = sbr.rel (%p289) target = $region12
      $region11: #{residual_block_pallas.1} parent=5 // pred_region
        %s293 = ssub.s32 %s23, 1
        // Predicated region
        $region13: #{residual_block_pallas.1} parent=11 // pred_check
          %p294 = pneg %p122
        $region14: #{residual_block_pallas.1} parent=11 // pred_check_branch
          %296 = sbr.rel (%p294) target = $region16
        $region15: #{residual_block_pallas.1} parent=11 // pred_region
          _
        $region16: #{residual_block_pallas.1} parent=11 // pred_fallthru
          _
        // Predicated region
        $region17: #{residual_block_pallas.1} parent=11 // pred_check
          %p297 = pneg %p143
        $region18: #{residual_block_pallas.1} parent=11 // pred_check_branch
          %299 = sbr.rel (%p297) target = $region20
        $region19: #{residual_block_pallas.1} parent=11 // pred_region
          _
        $region20: #{residual_block_pallas.1} parent=11 // pred_fallthru
          _
        // Predicated region
        $region21: #{residual_block_pallas.1} parent=11 // pred_check
          %p300 = pneg %p164
        $region22: #{residual_block_pallas.1} parent=11 // pred_check_branch
          %302 = sbr.rel (%p300) target = $region24
        $region23: #{residual_block_pallas.1} parent=11 // pred_region
          _
        $region24: #{residual_block_pallas.1} parent=11 // pred_fallthru
          _
        // Predicated region
        $region25: #{residual_block_pallas.1} parent=11 // pred_check
          %p303 = pneg %p185
        $region26: #{residual_block_pallas.1} parent=11 // pred_check_branch
          %305 = sbr.rel (%p303) target = $region28
        $region27: #{residual_block_pallas.1} parent=11 // pred_region
          _
        $region28: #{residual_block_pallas.1} parent=11 // pred_fallthru
          _
        // Predicated region
        $region29: #{residual_block_pallas.1} parent=11 // pred_check
          %p306 = pneg %p206
        $region30: #{residual_block_pallas.1} parent=11 // pred_check_branch
          %308 = sbr.rel (%p306) target = $region32
        $region31: #{residual_block_pallas.1} parent=11 // pred_region
          _
        $region32: #{residual_block_pallas.1} parent=11 // pred_fallthru
          _
        // Predicated region
        $region33: #{residual_block_pallas.1} parent=11 // pred_check
          %p309 = pneg %p227
        $region34: #{residual_block_pallas.1} parent=11 // pred_check_branch
          %311 = sbr.rel (%p309) target = $region36
        $region35: #{residual_block_pallas.1} parent=11 // pred_region
          _
        $region36: #{residual_block_pallas.1} parent=11 // pred_fallthru
          _
      $region12: #{residual_block_pallas.1} parent=5 // pred_fallthru
        _
      %p312 = scmp.lt.s32.totalorder %s23, 2
      // Predicated region
      $region37: #{residual_block_pallas.1} parent=5 // pred_check
        %p313 = pneg %p312
      $region38: #{residual_block_pallas.1} parent=5 // pred_check_branch
        %315 = sbr.rel (%p313) target = $region40
      $region39: #{residual_block_pallas.1} parent=5 // pred_region
        // Predicated region
        $region41: #{residual_block_pallas.1} parent=39 // pred_check
          %p316 = pneg %p43
        $region42: #{residual_block_pallas.1} parent=39 // pred_check_branch
          %318 = sbr.rel (%p316) target = $region44
        $region43: #{residual_block_pallas.1} parent=39 // pred_region
          %p319 = scmp.lt.s32.totalorder %s23, 1
          %s320 = scalar_select %p319, %s23, 1
          %s321 = smul.addr %s320, 4
          %s322 = scalar_lea.vmem %s0, %s321
        $region44: #{residual_block_pallas.1} parent=39 // pred_fallthru
          _
        // Predicated region
        $region45: #{residual_block_pallas.1} parent=39 // pred_check
          %p323 = pneg %p69
        $region46: #{residual_block_pallas.1} parent=39 // pred_check_branch
          %325 = sbr.rel (%p323) target = $region48
        $region47: #{residual_block_pallas.1} parent=39 // pred_region
          %p326 = scmp.lt.s32.totalorder %s23, 1
          %s327 = scalar_select %p326, %s23, 1
          %s328 = smul.addr %s327, 2
          %s329 = smul.addr %s328, 4
          %s330 = scalar_lea.vmem %s1, %s329
        $region48: #{residual_block_pallas.1} parent=39 // pred_fallthru
          _
        // Predicated region
        $region49: #{residual_block_pallas.1} parent=39 // pred_check
          %p331 = pneg %p95
        $region50: #{residual_block_pallas.1} parent=39 // pred_check_branch
          %333 = sbr.rel (%p331) target = $region52
        $region51: #{residual_block_pallas.1} parent=39 // pred_region
          %p334 = scmp.lt.s32.totalorder %s23, 1
          %s335 = scalar_select %p334, %s23, 1
          %s336 = smul.addr %s335, 4
          %s337 = scalar_lea.vmem %s2, %s336
        $region52: #{residual_block_pallas.1} parent=39 // pred_fallthru
          _
      $region40: #{residual_block_pallas.1} parent=5 // pred_fallthru
        _
      %p338 = scmp.le.s32.totalorder 1, %s23
      %p339 = scmp.lt.s32.totalorder %s23, 3
      %p340 = pnand %p338, %p339
      %p341 = pneg %p340
      // Predicated region
      $region53: #{residual_block_pallas.1} parent=5 // pred_check
        _
      $region54: #{residual_block_pallas.1} parent=5 // pred_check_branch
        %343 = sbr.rel (%p340) target = $region56
      $region55: #{residual_block_pallas.1} parent=5 // pred_region
        %s344 = ssub.s32 %s23, 1
        %p345 = scmp.lt.s32.totalorder %s28, 1
        %s346 = scalar_select %p345, %s28, 1
        %s347 = smul.addr %s346, 4
        %s348 = scalar_lea.vmem %s0, %s347
        %p349 = pneg %p49
        %p350 = pneg %p46
        %p351 = scmp.lt.s32.totalorder %s28, 1
        %s352 = scalar_select %p351, %s28, 1
        %s353 = smul.addr %s352, 2
        %s354 = smul.addr %s353, 4
        %s355 = scalar_lea.vmem %s1, %s354
        %p356 = pneg %p75
        %p357 = pneg %p72
        %p358 = scmp.lt.s32.totalorder %s28, 1
        %s359 = scalar_select %p358, %s28, 1
        %s360 = smul.addr %s359, 4
        %s361 = scalar_lea.vmem %s2, %s360
        %p362 = pneg %p101
        %p363 = pneg %p98
        %p364 = pneg %p122
        %p365 = pneg %p119
        %p366 = pneg %p143
        %p367 = pneg %p140
        %p368 = pneg %p164
        %p369 = pneg %p161
        %p370 = pneg %p185
        %p371 = pneg %p182
        %p372 = pneg %p206
        %p373 = pneg %p203
        %p374 = pneg %p227
        %p375 = pneg %p224
        %p376 = pneg %p253
        %p377 = pneg %p250
        %s378 = sand.u32 %s240, 1
        %s379 = scalar_lea.sflag [#allocation3], %s378
        %s380 = sand.u32 %s240, 1
        %s381 = smul.addr %s380, 8
        %s382 = scalar_lea.vmem [#allocation2], %s381
        %p383 = pneg %p279
        %p384 = pneg %p276
        %s385 = sand.u32 %s266, 1
        %s386 = scalar_lea.sflag [#allocation5], %s385
        %s387 = sand.u32 %s266, 1
        %s388 = smul.addr %s387, 8
        %s389 = scalar_lea.vmem [#allocation4], %s388
        %p390 = scmp.lt.s32.totalorder %s28, 1
        %s391 = scalar_select %p390, %s28, 1
        %s392 = smul.addr %s391, 4
        %s393 = scalar_lea.vmem %s0, %s392
        %p394 = scmp.lt.s32.totalorder %s28, 1
        %s395 = scalar_select %p394, %s28, 1
        %s396 = smul.addr %s395, 2
        %s397 = smul.addr %s396, 4
        %s398 = scalar_lea.vmem %s1, %s397
        %p399 = scmp.lt.s32.totalorder %s28, 1
        %s400 = scalar_select %p399, %s28, 1
        %s401 = smul.addr %s400, 4
        %s402 = scalar_lea.vmem %s2, %s401
        %v404 = vld [vmem:[%s393] sm:$0xf]
        %v405 = vld [vmem:[%s398] sm:$0xf]
        %v406 = vld [vmem:[%s398 + $0x4] sm:$0x3]
        %v407 = vld [vmem:[%s402] sm:$0xf]
        %v408 = vunpack.c.l.bf16 %v404
        %v409 = vld [vmem:[%s4] sm:$0xff]
        %411 = vset.pattern.permute.xlu0 0
        %412 = vperm.xlu0 %411, %v409
        %v413 = vpop.permute.xlu0 %412
        %v415 = vadd.f32 %v408, %v413
        %v416 = vld [vmem:[%s3] sm:$0xf]
        %vm417 = vcmask 64512
        %v419 = vsel %vm417, %v416, 0
        %vm421 = vcmask 1043456
        %v423 = vsel %vm421, %v407, 0
        %425 = vmatprep.subr.bf16.mxu0 0
        %426 = vmatpush1.bf16.msra.mxu0 0
        %427 = vmatprep.subr.bf16.mxu0 0
        %428 = vmatpush1.bf16.msra.mxu0 0
        %429 = vmatprep.subr.bf16.mxu0 0
        %430 = vmatpush1.bf16.msra.mxu0 0
        %431 = vmatprep.subr.bf16.mxu0 0
        %432 = vmatpush1.bf16.msra.mxu0 0
        %433 = vmatprep.subr.bf16.mxu0 0
        %434 = vmatpush1.bf16.msra.mxu0 0
        %435 = vmatprep.subr.bf16.mxu0 0
        %436 = vmatpush1.bf16.msra.mxu0 0
        %437 = vmatprep.subr.bf16.mxu0 0
        %438 = vmatpush1.bf16.msra.mxu0 0
        %439 = vmatprep.subr.bf16.mxu0 0
        %440 = vmatpush1.bf16.msra.mxu0 %v423
        %441 = vmatprep.subr.bf16.mxu0 0
        %442 = vmatpush2.bf16.msra.mxu0 0
        %443 = vmatprep.subr.bf16.mxu0 0
        %444 = vmatpush2.bf16.msra.mxu0 0
        %445 = vmatprep.subr.bf16.mxu0 0
        %446 = vmatpush2.bf16.msra.mxu0 0
        %447 = vmatprep.subr.bf16.mxu0 0
        %448 = vmatpush2.bf16.msra.mxu0 0
        %449 = vmatprep.subr.bf16.mxu0 0
        %450 = vmatpush2.bf16.msra.mxu0 0
        %451 = vmatprep.subr.bf16.mxu0 0
        %452 = vmatpush2.bf16.msra.mxu0 0
        %453 = vmatprep.subr.bf16.mxu0 0
        %454 = vmatpush2.bf16.msra.mxu0 0
        %455 = vmatprep.subr.bf16.mxu0 0
        %456 = vmatpush2.bf16.msra.mxu0 0
        %457 = vmatprep.mubr.bf16.mxu0 0
        %458 = vmatmul.mubr.bf16.gmra.mxu0 %v419
        %v459 = vpop.f32.mrf.mxu0
        %v460 = vadd.f32 0.0, %v459
        %v461 = vpop.f32.mrf.mxu0
        %v462 = vpop.f32.mrf.mxu0
        %v463 = vpop.f32.mrf.mxu0
        %464 = vdwg.mxu0
        %v465 = vadd.f32 %v415, %v460
        %467 = vrot.lane.b32.xlu0 %v465, 2
        %v468 = vpop.permute.xlu0 %467
        %vm470 = vcmask 15360
        %v471 = vsel %vm470, 0.0, %v468
        %vm472 = vcmask 146432
        %v473 = vsel %vm472, %v471, 0.0
        %v474 = vunpack.c.l.bf16 %v405
        %v475 = vunpack.c.l.bf16 %v406
        %v477 = vrot.slane %v473, 4
        %479 = vrot.lane.b32.xlu0 %v477, 126
        %v480 = vpop.permute.xlu0 %479
        %482 = vrot.lane.b32.xlu0 %v477, 124
        %v483 = vpop.permute.xlu0 %482
        %v485 = vsel %vm421, %v475, %v477
        %v486 = vsel %vm421, %v477, %v480
        %v487 = vsel %vm421, %v480, %v483
        %v488 = vpack.c.bf16 %v485, %v474
        %v489 = vpack.c.bf16 %v487, %v486
        %v490 = vpack.c.bf16 %v483, %v483
        %v491 = vld [vmem:[%s5] sm:$0xf]
        %v492 = vld [vmem:[%s5 + $0x4] sm:$0xf]
        %v493 = vld [vmem:[%s6] sm:$0xff]
        %v494 = vld [vmem:[%s6 + $0x8] sm:$0xff]
        %496 = vset.pattern.permute.xlu0 0
        %497 = vperm.xlu0 %496, %v493
        %v498 = vpop.permute.xlu0 %497
        %501 = vset.pattern.permute.xlu0 0
        %502 = vperm.xlu0 %501, %v494
        %v503 = vpop.permute.xlu0 %502
        %v507 = vunpack.c.l.b16 %v491
        %v508 = vunpack.c.l.b16 %v492
        %v509 = vpack.c.b16 %v508, %v507
        %vm510 = vcmask 293888
        %v512 = vsel %vm510, %v509, 0
        %vm514 = vcmask 1041408
        %v516 = vsel %vm514, %v490, 0
        %518 = vmatprep.subr.bf16.mxu0 0
        %519 = vmatpush1.bf16.msra.mxu0 0
        %520 = vmatprep.subr.bf16.mxu0 0
        %521 = vmatpush1.bf16.msra.mxu0 0
        %522 = vmatprep.subr.bf16.mxu0 0
        %523 = vmatpush1.bf16.msra.mxu0 0
        %524 = vmatprep.subr.bf16.mxu0 0
        %525 = vmatpush1.bf16.msra.mxu0 0
        %526 = vmatprep.subr.bf16.mxu0 0
        %527 = vmatpush1.bf16.msra.mxu0 0
        %528 = vmatprep.subr.bf16.mxu0 0
        %529 = vmatpush1.bf16.msra.mxu0 %v516
        %530 = vmatprep.subr.bf16.mxu0 0
        %531 = vmatpush1.bf16.msra.mxu0 %v489
        %532 = vmatprep.subr.bf16.mxu0 0
        %533 = vmatpush1.bf16.msra.mxu0 %v488
        %534 = vmatprep.subr.bf16.mxu0 0
        %535 = vmatpush2.bf16.msra.mxu0 0
        %536 = vmatprep.subr.bf16.mxu0 0
        %537 = vmatpush2.bf16.msra.mxu0 0
        %538 = vmatprep.subr.bf16.mxu0 0
        %539 = vmatpush2.bf16.msra.mxu0 0
        %540 = vmatprep.subr.bf16.mxu0 0
        %541 = vmatpush2.bf16.msra.mxu0 0
        %542 = vmatprep.subr.bf16.mxu0 0
        %543 = vmatpush2.bf16.msra.mxu0 0
        %544 = vmatprep.subr.bf16.mxu0 0
        %545 = vmatpush2.bf16.msra.mxu0 0
        %546 = vmatprep.subr.bf16.mxu0 0
        %547 = vmatpush2.bf16.msra.mxu0 0
        %548 = vmatprep.subr.bf16.mxu0 0
        %549 = vmatpush2.bf16.msra.mxu0 0
        %550 = vmatprep.mubr.bf16.mxu0 0
        %551 = vmatmul.mubr.bf16.gmra.mxu0 %v512
        %v552 = vpop.f32.mrf.mxu0
        %v553 = vadd.f32 %v498, %v552
        %v554 = vpop.f32.mrf.mxu0
        %v555 = vpop.f32.mrf.mxu0
        %v556 = vadd.f32 %v503, %v555
        %v557 = vpop.f32.mrf.mxu0
        %558 = vdwg.mxu0
        %v559 = vtanh.pop %v553
        %v560 = vxor.u32 %v556, 2147483648
        %v561 = vmul.f32 %v560, 1.442695
        %v562 = vpow.pop %v561
        %v563 = vadd.f32 %v562, 1.0
        %v564 = vrcp.pop %v563
        %v565 = vmul.f32 1.0, %v564
        %v566 = vmul.f32 %v559, %v565
        %v567 = vpack.c.bf16 %v408, %v566
        %v568 = vld [vmem:[%s7] sm:$0xf]
        %v569 = vld [vmem:[%s7 + $0x4] sm:$0xf]
        %v570 = vld [vmem:[%s8] sm:$0xff]
        %v571 = vld [vmem:[%s8 + $0x8] sm:$0xff]
        %573 = vset.pattern.permute.xlu0 0
        %574 = vperm.xlu0 %573, %v570
        %v575 = vpop.permute.xlu0 %574
        %578 = vset.pattern.permute.xlu0 0
        %579 = vperm.xlu0 %578, %v571
        %v580 = vpop.permute.xlu0 %579
        %v584 = vunpack.c.l.b16 %v568
        %v585 = vunpack.c.l.b16 %v569
        %v586 = vpack.c.b16 %v585, %v584
        %vm587 = vcmask 130048
        %v589 = vsel %vm587, %v586, 0
        %591 = vmatprep.subr.bf16.mxu0 0
        %592 = vmatpush1.bf16.msra.mxu0 0
        %593 = vmatprep.subr.bf16.mxu0 0
        %594 = vmatpush1.bf16.msra.mxu0 0
        %595 = vmatprep.subr.bf16.mxu0 0
        %596 = vmatpush1.bf16.msra.mxu0 0
        %597 = vmatprep.subr.bf16.mxu0 0
        %598 = vmatpush1.bf16.msra.mxu0 0
        %599 = vmatprep.subr.bf16.mxu0 0
        %600 = vmatpush1.bf16.msra.mxu0 0
        %601 = vmatprep.subr.bf16.mxu0 0
        %602 = vmatpush1.bf16.msra.mxu0 0
        %603 = vmatprep.subr.bf16.mxu0 0
        %604 = vmatpush1.bf16.msra.mxu0 0
        %605 = vmatprep.subr.bf16.mxu0 0
        %606 = vmatpush1.bf16.msra.mxu0 %v567
        %607 = vmatprep.subr.bf16.mxu0 0
        %608 = vmatpush2.bf16.msra.mxu0 0
        %609 = vmatprep.subr.bf16.mxu0 0
        %610 = vmatpush2.bf16.msra.mxu0 0
        %611 = vmatprep.subr.bf16.mxu0 0
        %612 = vmatpush2.bf16.msra.mxu0 0
        %613 = vmatprep.subr.bf16.mxu0 0
        %614 = vmatpush2.bf16.msra.mxu0 0
        %615 = vmatprep.subr.bf16.mxu0 0
        %616 = vmatpush2.bf16.msra.mxu0 0
        %617 = vmatprep.subr.bf16.mxu0 0
        %618 = vmatpush2.bf16.msra.mxu0 0
        %619 = vmatprep.subr.bf16.mxu0 0
        %620 = vmatpush2.bf16.msra.mxu0 0
        %621 = vmatprep.subr.bf16.mxu0 0
        %622 = vmatpush2.bf16.msra.mxu0 0
        %623 = vmatprep.mubr.bf16.mxu0 0
        %624 = vmatmul.mubr.bf16.gmra.mxu0 %v589
        %v625 = vpop.f32.mrf.mxu0
        %v626 = vadd.f32 %v575, %v625
        %v627 = vpop.f32.mrf.mxu0
        %v628 = vpop.f32.mrf.mxu0
        %v629 = vadd.f32 %v580, %v628
        %v630 = vpop.f32.mrf.mxu0
        %631 = vdwg.mxu0
        %632 = vst.msk [vmem:[%s382] sm:$0xff] %vm587, %v626
        %633 = vst.msk [vmem:[%s389] sm:$0xff] %vm587, %v629
        %s634 = sand.u32 %s240, 1
        %s635 = scalar_lea.sflag [#allocation3], %s634
        %s636 = sand.u32 %s240, 1
        %s637 = smul.addr %s636, 8
        %s638 = scalar_lea.vmem [#allocation2], %s637
        %s639 = sand.u32 %s266, 1
        %s640 = scalar_lea.sflag [#allocation5], %s639
        %s641 = sand.u32 %s266, 1
        %s642 = smul.addr %s641, 8
        %s643 = scalar_lea.vmem [#allocation4], %s642
        // Predicated region
        $region57: #{residual_block_pallas.1} parent=55 // pred_check
          %p644 = pneg %p250
        $region58: #{residual_block_pallas.1} parent=55 // pred_check_branch
          %646 = sbr.rel (%p644) target = $region60
        $region59: #{residual_block_pallas.1} parent=55 // pred_region
          %s648 = ssub.s32 128, 128
          %649 = vsyncadd %s635, %s648
          %s650 = smul.addr %s28, 128
          %s651 = scalar_lea.hbm %s9, %s650
          %s653 = sshll.u32 %s638, 4
          %s654 = int_to_ptr.vmem [resolvable:$true] %s653
          %656 = dma.vmem_to_hbm [thread:$0]  %s654, 128, %s651, %s635
        $region60: #{residual_block_pallas.1} parent=55 // pred_fallthru
          _
        // Predicated region
        $region61: #{residual_block_pallas.1} parent=55 // pred_check
          %p657 = pneg %p276
        $region62: #{residual_block_pallas.1} parent=55 // pred_check_branch
          %659 = sbr.rel (%p657) target = $region64
        $region63: #{residual_block_pallas.1} parent=55 // pred_region
          %s661 = ssub.s32 128, 128
          %662 = vsyncadd %s640, %s661
          %s663 = smul.addr %s28, 128
          %s664 = scalar_lea.hbm %s10, %s663
          %s666 = sshll.u32 %s643, 4
          %s667 = int_to_ptr.vmem [resolvable:$true] %s666
          %669 = dma.vmem_to_hbm [thread:$0]  %s667, 128, %s664, %s640
        $region64: #{residual_block_pallas.1} parent=55 // pred_fallthru
          _
      $region56: #{residual_block_pallas.1} parent=5 // pred_fallthru
        _
      %p670 = scmp.le.s32.totalorder 2, %s23
      // Predicated region
      $region65: #{residual_block_pallas.1} parent=5 // pred_check
        %p671 = pneg %p670
      $region66: #{residual_block_pallas.1} parent=5 // pred_check_branch
        %673 = sbr.rel (%p671) target = $region68
      $region67: #{residual_block_pallas.1} parent=5 // pred_region
        %s674 = ssub.s32 %s23, 2
        // Predicated region
        $region69: #{residual_block_pallas.1} parent=67 // pred_check
          %p675 = pneg %p256
        $region70: #{residual_block_pallas.1} parent=67 // pred_check_branch
          %677 = sbr.rel (%p675) target = $region72
        $region71: #{residual_block_pallas.1} parent=67 // pred_region
          %s678 = sand.u32 %s241, 1
          %s679 = scalar_lea.sflag [#allocation3], %s678
          %s680 = sand.u32 %s241, 1
          %s681 = smul.addr %s680, 8
          %s682 = scalar_lea.vmem [#allocation2], %s681
          %683 = dma.done %s679, 128
        $region72: #{residual_block_pallas.1} parent=67 // pred_fallthru
          _
        // Predicated region
        $region73: #{residual_block_pallas.1} parent=67 // pred_check
          %p684 = pneg %p282
        $region74: #{residual_block_pallas.1} parent=67 // pred_check_branch
          %686 = sbr.rel (%p684) target = $region76
        $region75: #{residual_block_pallas.1} parent=67 // pred_region
          %s687 = sand.u32 %s267, 1
          %s688 = scalar_lea.sflag [#allocation5], %s687
          %s689 = sand.u32 %s267, 1
          %s690 = smul.addr %s689, 8
          %s691 = scalar_lea.vmem [#allocation4], %s690
          %692 = dma.done %s688, 128
        $region76: #{residual_block_pallas.1} parent=67 // pred_fallthru
          _
      $region68: #{residual_block_pallas.1} parent=5 // pred_fallthru
        _
    $region6: #{residual_block_pallas.1} parent=1 // loop_footer
      %s27 = sadd.s32 1, %s23
    $region7: #{residual_block_pallas.1} parent=1 // loop_footer_branch
      %22 = sbr.rel target = $region3
    $region8: #{residual_block_pallas.1} parent=1 // loop_exit
      _
    %693 = vsyncpa [#allocation3], 1
    %s694 = scalar_lea.sflag [#allocation3], 1
    %695 = vsyncpa %s694, 1
    %696 = vsyncpa [#allocation5], 1
    %s697 = scalar_lea.sflag [#allocation5], 1
    %698 = vsyncpa %s697, 1

</llo_original>
